<compile_context>
chip_gen: v5e
topology: v5e:2x2
jax: 0.10.0
libtpu: 0.0.40
codegen_flags: <defaults>
</compile_context>

<pallas_src>
import jax
import jax.numpy as jnp
from jax import lax
from jax.experimental import pallas as pl
from jax.experimental.pallas import tpu as pltpu

BN_EPS = 1e-5  # PyTorch BatchNorm1d default.


def _hidden_to_normal_kernel(x_ref, w_ref, mu_ref, sigma_ref):
    # x_ref:     (B, 2H)        bf16   concat(h, c)
    # w_ref:     (Rpad, 2C)     bf16   rows [0:2H] = [W_mu || W_lv],
    #                                  row 2H = gamma, row 2H+1 = beta
    #                                  (lv half of gamma/beta pre-scaled by 0.5)
    # mu_ref:    (B, C)         f32
    # sigma_ref: (B, C)         f32
    B, K = x_ref.shape
    C = mu_ref.shape[1]

    x = x_ref[...]                                   # bf16
    wb = w_ref[...]                                  # bf16
    w = wb[:K, :]                                    # (2H, 2C) weights
    gb = wb[K:K + 2, :].astype(jnp.float32)          # (2, 2C) packed BN params
    gamma = gb[0:1, :]
    beta = gb[1:2, :]

    # Single K=2H MXU matmul, f32 accumulation.  Linear biases omitted (they
    # cancel exactly under training-mode BatchNorm).
    z = jnp.dot(x, w, preferred_element_type=jnp.float32)        # (B, 2C) f32

    # Training-mode BatchNorm1d (biased variance), two-pass form for stability.
    inv_b = jnp.float32(1.0 / B)
    mean = jnp.sum(z, axis=0, keepdims=True) * inv_b             # (1, 2C)
    zc = z - mean
    var = jnp.sum(zc * zc, axis=0, keepdims=True) * inv_b        # (1, 2C)
    scale = gamma * lax.rsqrt(var + BN_EPS)                      # rsqrt -> EUP
    y = zc * scale + beta                                        # (B, 2C)

    # First C columns: mu.  Last C columns: sigma = exp(0.5*lv) with the 0.5
    # already folded into gamma/beta -> exp only over the lv half.
    mu_ref[...] = y[:, :C].astype(mu_ref.dtype)
    sigma_ref[...] = jnp.exp(y[:, C:]).astype(sigma_ref.dtype)


def hidden_to_normal(hidden, params):
    """hidden: tuple (h_n, c_n), each (1, B, H). Returns (mu, sigma), each (B, C)."""
    h_n, c_n = hidden
    # Tiny XLA copy; fuses with the upstream LSTM epilogue.  bf16 is the native
    # MXU input dtype (f32 accumulation happens in-kernel).
    x = jnp.concatenate([h_n[0], c_n[0]], axis=1).astype(jnp.bfloat16)   # (B, 2H)
    w = params["w_packed"]                                               # (Rpad, 2C)
    B, K = x.shape
    two_c = w.shape[1]
    C = two_c // 2

    vmem = pl.BlockSpec(memory_space=pltpu.MemorySpace.VMEM)
    cost = pl.CostEstimate(
        flops=2 * B * K * two_c,
        transcendentals=B * C,
        bytes_accessed=x.size * 2 + w.size * 2 + 2 * B * C * 4,
    )
    mu, sigma = pl.pallas_call(
        _hidden_to_normal_kernel,
        out_shape=(jax.ShapeDtypeStruct((B, C), jnp.float32),
                   jax.ShapeDtypeStruct((B, C), jnp.float32)),
        in_specs=[vmem, vmem],
        out_specs=(vmem, vmem),
        cost_estimate=cost,
    )(x, w)
    return mu, sigma


def init_params(key, hidden_size, code_size):
    in_dim = hidden_size * 2
    k1, k2 = jax.random.split(key, 2)
    bound = 1.0 / jnp.sqrt(in_dim)
    # PyTorch-style Linear weight init, stored pre-transposed as (in, out).
    w_mu = jax.random.uniform(k1, (in_dim, code_size), jnp.float32, -bound, bound)
    w_lv = jax.random.uniform(k2, (in_dim, code_size), jnp.float32, -bound, bound)
    # Linear biases intentionally omitted (cancel under training-mode BN).
    w_all = jnp.concatenate([w_mu, w_lv], axis=1)                 # (2H, 2C)

    # BatchNorm1d default affine: gamma = 1, beta = 0.  Fold the 0.5 of
    # exp(0.5 * lv) into the lv half of gamma/beta.
    gamma_row = jnp.concatenate([jnp.ones((code_size,), jnp.float32),
                                 0.5 * jnp.ones((code_size,), jnp.float32)])
    beta_row = jnp.zeros((2 * code_size,), jnp.float32)

    # Single packed slab (one input DMA for weights + BN params):
    #   rows [0:2H] weights, row 2H = gamma, row 2H+1 = beta, zero-padded rows.
    rows_pad = -(-(in_dim + 2) // 8) * 8
    slab = jnp.zeros((rows_pad, 2 * code_size), jnp.float32)
    slab = slab.at[:in_dim].set(w_all)
    slab = slab.at[in_dim].set(gamma_row)
    slab = slab.at[in_dim + 1].set(beta_row)
    # bf16 storage (native MXU input); gamma/beta at default init are exact in bf16.
    return {"w_packed": slab.astype(jnp.bfloat16)}


def _reference(hidden, params, hidden_size, code_size):
    """Pure-JAX mirror of the PyTorch forward (training-mode BN, default affine)."""
    x = jnp.concatenate(hidden, axis=2)[0].astype(jnp.bfloat16)          # (B, 2H)
    K = 2 * hidden_size
    wb = params["w_packed"]
    w_mu = wb[:K, :code_size]
    w_lv = wb[:K, code_size:]
    gamma = wb[K:K + 1, :].astype(jnp.float32)
    beta = wb[K + 1:K + 2, :].astype(jnp.float32)

    mu_lin = jnp.dot(x, w_mu, preferred_element_type=jnp.float32)
    lv_lin = jnp.dot(x, w_lv, preferred_element_type=jnp.float32)

    def bn(z, g, b):
        m = z.mean(0, keepdims=True)
        v = ((z - m) ** 2).mean(0, keepdims=True)                # biased, like PyTorch
        return (z - m) / jnp.sqrt(v + BN_EPS) * g + b

    mu = bn(mu_lin, gamma[:, :code_size], beta[:, :code_size])
    lv = bn(lv_lin, gamma[:, code_size:], beta[:, code_size:])   # 0.5 already folded
    return mu, jnp.exp(lv)


if __name__ == "__main__":
    hidden_size = 32
    code_size = 16
    batch = 8

    key = jax.random.PRNGKey(0)
    kp, kh, kc = jax.random.split(key, 3)

    params = init_params(kp, hidden_size, code_size)

    # hidden = (h_n, c_n), each (num_layers=1, batch, hidden_size)
    h_n = jax.random.normal(kh, (1, batch, hidden_size), jnp.float32)
    c_n = jax.random.normal(kc, (1, batch, hidden_size), jnp.float32)

    mu, sigma = hidden_to_normal((h_n, c_n), params)
    jax.block_until_ready((mu, sigma))

    assert mu.shape == (batch, code_size)
    assert sigma.shape == (batch, code_size)
    assert bool(jnp.all(sigma > 0))

    mu_ref, sigma_ref = _reference((h_n, c_n), params, hidden_size, code_size)
    assert bool(jnp.allclose(mu, mu_ref, rtol=1e-4, atol=1e-4))
    assert bool(jnp.allclose(sigma, sigma_ref, rtol=1e-4, atol=1e-4))

    print("KERNEL_OK")
</pallas_src>

<mosaic_0001>
module attributes {stable_mosaic.version = 11 : i64} {
  func.func @_hidden_to_normal_kernel(%arg0: memref<8x64xbf16, #tpu.memory_space<vmem>>, %arg1: memref<72x32xbf16, #tpu.memory_space<vmem>>, %arg2: memref<8x16xf32, #tpu.memory_space<vmem>>, %arg3: memref<8x16xf32, #tpu.memory_space<vmem>>) attributes {dimension_semantics = [], scalar_prefetch = 0 : i64, scratch_operands = 0 : i64, tpu.core_type = #tpu.core_type<tc>} {
    %c0 = arith.constant 0 : index
    %c0_0 = arith.constant 0 : index
    %0 = vector.load %arg0[%c0, %c0_0] : memref<8x64xbf16, #tpu.memory_space<vmem>>, vector<8x64xbf16>
    %c0_1 = arith.constant 0 : index
    %c0_2 = arith.constant 0 : index
    %1 = vector.load %arg1[%c0_1, %c0_2] : memref<72x32xbf16, #tpu.memory_space<vmem>>, vector<72x32xbf16>
    %2 = vector.extract_strided_slice %1 {offsets = [0, 0], sizes = [64, 32], strides = [1, 1]} : vector<72x32xbf16> to vector<64x32xbf16>
    %3 = vector.extract_strided_slice %1 {offsets = [64, 0], sizes = [2, 32], strides = [1, 1]} : vector<72x32xbf16> to vector<2x32xbf16>
    %4 = arith.extf %3 : vector<2x32xbf16> to vector<2x32xf32>
    %5 = vector.extract_strided_slice %4 {offsets = [0, 0], sizes = [1, 32], strides = [1, 1]} : vector<2x32xf32> to vector<1x32xf32>
    %6 = vector.extract_strided_slice %4 {offsets = [1, 0], sizes = [1, 32], strides = [1, 1]} : vector<2x32xf32> to vector<1x32xf32>
    %cst = arith.constant dense<0.000000e+00> : vector<8x32xf32>
    %7 = tpu.matmul %0, %2, %cst {dimension_numbers = #tpu.dot_dimension_numbers<[1], [0], [0], [1], [0, 0, 1, 1], [], []>} : vector<8x64xbf16>, vector<64x32xbf16>, vector<8x32xf32> -> vector<8x32xf32>
    %cst_3 = arith.constant dense<0.000000e+00> : vector<32xf32>
    %8 = vector.multi_reduction <add>, %7, %cst_3 [0] : vector<8x32xf32> to vector<32xf32>
    %9 = vector.shape_cast %8 : vector<32xf32> to vector<1x32xf32>
    %cst_4 = arith.constant 1.250000e-01 : f32
    %10 = vector.broadcast %cst_4 : f32 to vector<1x32xf32>
    %11 = arith.mulf %9, %10 : vector<1x32xf32>
    %12 = vector.broadcast %11 : vector<1x32xf32> to vector<8x32xf32>
    %13 = arith.subf %7, %12 : vector<8x32xf32>
    %14 = arith.mulf %13, %13 : vector<8x32xf32>
    %cst_5 = arith.constant dense<0.000000e+00> : vector<32xf32>
    %15 = vector.multi_reduction <add>, %14, %cst_5 [0] : vector<8x32xf32> to vector<32xf32>
    %16 = vector.shape_cast %15 : vector<32xf32> to vector<1x32xf32>
    %cst_6 = arith.constant 1.250000e-01 : f32
    %17 = vector.broadcast %cst_6 : f32 to vector<1x32xf32>
    %18 = arith.mulf %16, %17 : vector<1x32xf32>
    %cst_7 = arith.constant 9.99999974E-6 : f32
    %19 = vector.broadcast %cst_7 : f32 to vector<1x32xf32>
    %20 = arith.addf %18, %19 : vector<1x32xf32>
    %21 = math.rsqrt %20 : vector<1x32xf32>
    %22 = arith.mulf %5, %21 : vector<1x32xf32>
    %23 = vector.broadcast %22 : vector<1x32xf32> to vector<8x32xf32>
    %24 = arith.mulf %13, %23 : vector<8x32xf32>
    %25 = vector.broadcast %6 : vector<1x32xf32> to vector<8x32xf32>
    %26 = arith.addf %24, %25 : vector<8x32xf32>
    %27 = vector.extract_strided_slice %26 {offsets = [0, 0], sizes = [8, 16], strides = [1, 1]} : vector<8x32xf32> to vector<8x16xf32>
    %c0_8 = arith.constant 0 : index
    %c0_9 = arith.constant 0 : index
    %28 = vector.load %arg2[%c0_8, %c0_9] : memref<8x16xf32, #tpu.memory_space<vmem>>, vector<8x16xf32>
    tpu.vector_store %arg2[%c0_8, %c0_9], %27 {strides = array<i32>} : memref<8x16xf32, #tpu.memory_space<vmem>>, vector<8x16xf32>,
    %29 = vector.extract_strided_slice %26 {offsets = [0, 16], sizes = [8, 16], strides = [1, 1]} : vector<8x32xf32> to vector<8x16xf32>
    %30 = math.exp %29 : vector<8x16xf32>
    %c0_10 = arith.constant 0 : index
    %c0_11 = arith.constant 0 : index
    %31 = vector.load %arg3[%c0_10, %c0_11] : memref<8x16xf32, #tpu.memory_space<vmem>>, vector<8x16xf32>
    tpu.vector_store %arg3[%c0_10, %c0_11], %30 {strides = array<i32>} : memref<8x16xf32, #tpu.memory_space<vmem>>, vector<8x16xf32>,
    return
  }
}

</mosaic_0001>

<llo_original>
// kernel: tpu_custom_call.1
$region0: #{tpu_custom_call.1}
  #allocation0 [shape = 'u32[]', space=smem, size = 0x4, offset = 0x4, fixed_abs, tag = 'smem constant byte address 0x4 - core index']
  #allocation1 [shape = 'u32[72,128]{1,0:T(1,128)}', space=vmem, size = 0x9000, scoped, tag = 'internal scratch']
  %s0 = inlined_call_operand.vmem [shape: bf16[8,64], index: 0, kind: input, shape index: {}]
  %s1 = inlined_call_operand.vmem [shape: bf16[72,32], index: 1, kind: input, shape index: {}]
  %s2 = inlined_call_operand.hbm [shape: f32[8,16], index: 2, kind: output, shape index: {0}]
  %s3 = inlined_call_operand.hbm [shape: f32[8,16], index: 3, kind: output, shape index: {1}]
  %4 = xla_tuple %s2, %s3
  %s5 = sld [smem:[#allocation0]]
  $region26: #{tpu_custom_call.1} parent=0
    _
  %s7 = ssub.s32 1, %s5
  %s8 = scalar_select 0, %s7, %s5
  $region1: #{tpu_custom_call.1} parent=0
    #allocation2 [shape = 'u8[4096]{0}', space=vmem, size = 0x1000, scoped, tag = 'output window, operand 0, single buffered']
    #allocation3 [shape = 's32[1]{0}', space=sflag, size = 0x4, scoped, tag = 'scoped memory for tpu_custom_call.1']
    #allocation4 [shape = 'u8[4096]{0}', space=vmem, size = 0x1000, scoped, tag = 'output window, operand 1, single buffered']
    #allocation5 [shape = 's32[1]{0}', space=sflag, size = 0x4, scoped, tag = 'scoped memory for tpu_custom_call.1']
    %9 = vsyncpa [#allocation3], 0
    %10 = vsyncpa [#allocation5], 0
    // Predicated region
    $region2: #{tpu_custom_call.1} parent=1 // pred_check
      _
    $region3: #{tpu_custom_call.1} parent=1 // pred_check_branch
      %12 = sbr.rel (0) target = $region5
    $region4: #{tpu_custom_call.1} parent=1 // pred_region
      _
    $region5: #{tpu_custom_call.1} parent=1 // pred_fallthru
      _
    // Predicated region
    $region6: #{tpu_custom_call.1} parent=1 // pred_check
      _
    $region7: #{tpu_custom_call.1} parent=1 // pred_check_branch
      %14 = sbr.rel (0) target = $region9
    $region8: #{tpu_custom_call.1} parent=1 // pred_region
      _
    $region9: #{tpu_custom_call.1} parent=1 // pred_fallthru
      _
    %v16 = vld [vmem:[%s0] sm:$0xf]
    %v17 = vld [vmem:[%s1] sm:$0xf]
    %v18 = vld [vmem:[%s1 + $0x4] sm:$0xf]
    %v19 = vld [vmem:[%s1 + $0x8] sm:$0xf]
    %v20 = vld [vmem:[%s1 + $0xc] sm:$0xf]
    %v21 = vld [vmem:[%s1 + $0x10] sm:$0xf]
    %v22 = vld [vmem:[%s1 + $0x14] sm:$0xf]
    %v23 = vld [vmem:[%s1 + $0x18] sm:$0xf]
    %v24 = vld [vmem:[%s1 + $0x1c] sm:$0xf]
    %v25 = vld [vmem:[%s1 + $0x20] sm:$0xf]
    %v26 = vunpack.c.l.bf16 %v25
    %v35 = vunpack.c.l.b16 %v17
    %v36 = vunpack.c.l.b16 %v18
    %v37 = vunpack.c.l.b16 %v19
    %v38 = vunpack.c.l.b16 %v20
    %v39 = vunpack.c.l.b16 %v21
    %v40 = vunpack.c.l.b16 %v22
    %v41 = vunpack.c.l.b16 %v23
    %v42 = vunpack.c.l.b16 %v24
    %v43 = vpack.c.b16 %v36, %v35
    %v44 = vpack.c.b16 %v38, %v37
    %v45 = vpack.c.b16 %v40, %v39
    %v46 = vpack.c.b16 %v42, %v41
    %vm51 = vcmask 523264
    %v53 = vsel %vm51, %v16, 0
    %55 = vmatpush.bf16.msra.mxu0 0
    %56 = vmatpush.bf16.msra.mxu0 0
    %57 = vmatpush.bf16.msra.mxu0 0
    %58 = vmatpush.bf16.msra.mxu0 0
    %59 = vmatpush.bf16.msra.mxu0 %v46
    %60 = vmatpush.bf16.msra.mxu0 %v45
    %61 = vmatpush.bf16.msra.mxu0 %v44
    %62 = vmatpush.bf16.msra.mxu0 %v43
    %63 = vmatmul.bf16.gmra.mxu0 %v53
    %v64 = vpop.f32.mrf.mxu0
    %v65 = vadd.f32 0.0, %v64
    %v66 = vpop.f32.mrf.mxu0
    %67 = vdwg.mxu0
    %vm68 = vcmask 261120
    %v69 = vsel %vm68, %v65, 0.0
    %v70 = vrot.slane %v69, 4
    %v71 = vadd.f32 %v69, %v70
    %v72 = vrot.slane %v71, 2
    %v73 = vadd.f32 %v71, %v72
    %v74 = vrot.slane %v73, 1
    %v75 = vadd.f32 %v73, %v74
    %v76 = vmul.f32 %v75, 0.125
    %v77 = vsub.f32 %v65, %v76
    %v78 = vmul.f32 %v77, %v77
    %v79 = vsel %vm68, %v78, 0.0
    %v80 = vrot.slane %v79, 4
    %v81 = vadd.f32 %v79, %v80
    %v82 = vrot.slane %v81, 2
    %v83 = vadd.f32 %v81, %v82
    %v84 = vrot.slane %v83, 1
    %v85 = vadd.f32 %v83, %v84
    %v86 = vmul.f32 %v85, 0.125
    %v87 = vadd.f32 %v86, 1e-05
    %v88 = vrsqrt.pop %v87
    %v89 = vmul.f32 %v88, %v87
    %v90 = vmul.f32 %v89, %v88
    %v91 = vmul.f32 0.5, %v90
    %v92 = vsub.f32 1.5, %v91
    %v93 = vmul.f32 %v88, %v92
    %vm94 = vweird.f32 %v87
    %vm95 = vweird.f32 %v88
    %vm96 = vmor %vm94, %vm95
    %v97 = vsel %vm96, %v88, %v93
    %v98 = vmul.f32 %v26, %v97
    %v99 = vperm.slane %v98, 0
    %v100 = vmul.f32 %v77, %v99
    %v101 = vperm.slane %v26, 1
    %v102 = vadd.f32 %v100, %v101
    %vm103 = vcmask 130048
    %104 = vst.msk [vmem:[#allocation2] sm:$0xff] %vm103, %v102
    %v105 = vmul.f32 %v102, 1.442695
    %v106 = vpow.pop %v105
    %108 = vrot.lane.b32.xlu0 %v106, 112
    %v109 = vpop.permute.xlu0 %108
    %111 = vst.msk [vmem:[#allocation4] sm:$0xff] %vm103, %v109
    // Predicated region
    $region10: #{tpu_custom_call.1} parent=1 // pred_check
      _
    $region11: #{tpu_custom_call.1} parent=1 // pred_check_branch
      %113 = sbr.rel (0) target = $region13
    $region12: #{tpu_custom_call.1} parent=1 // pred_region
      %115 = vsyncadd [#allocation3], 0
      %s117 = sshll.u32 [#allocation2], 4
      %s118 = int_to_ptr.vmem [resolvable:$true] %s117
      %s119 = sshll.u32 %s2, 4
      %s120 = int_to_ptr.hbm [resolvable:$true] %s119
      %122 = dma.vmem_to_hbm [thread:$0]  %s118, 128, %s120, [#allocation3]
    $region13: #{tpu_custom_call.1} parent=1 // pred_fallthru
      _
    // Predicated region
    $region14: #{tpu_custom_call.1} parent=1 // pred_check
      _
    $region15: #{tpu_custom_call.1} parent=1 // pred_check_branch
      %124 = sbr.rel (0) target = $region17
    $region16: #{tpu_custom_call.1} parent=1 // pred_region
      %126 = vsyncadd [#allocation5], 0
      %s128 = sshll.u32 [#allocation4], 4
      %s129 = int_to_ptr.vmem [resolvable:$true] %s128
      %s130 = sshll.u32 %s3, 4
      %s131 = int_to_ptr.hbm [resolvable:$true] %s130
      %133 = dma.vmem_to_hbm [thread:$0]  %s129, 128, %s131, [#allocation5]
    $region17: #{tpu_custom_call.1} parent=1 // pred_fallthru
      _
    // Predicated region
    $region18: #{tpu_custom_call.1} parent=1 // pred_check
      _
    $region19: #{tpu_custom_call.1} parent=1 // pred_check_branch
      %135 = sbr.rel (0) target = $region21
    $region20: #{tpu_custom_call.1} parent=1 // pred_region
      %137 = dma.done [#allocation3], 128
    $region21: #{tpu_custom_call.1} parent=1 // pred_fallthru
      _
    // Predicated region
    $region22: #{tpu_custom_call.1} parent=1 // pred_check
      _
    $region23: #{tpu_custom_call.1} parent=1 // pred_check_branch
      %139 = sbr.rel (0) target = $region25
    $region24: #{tpu_custom_call.1} parent=1 // pred_region
      %141 = dma.done [#allocation5], 128
    $region25: #{tpu_custom_call.1} parent=1 // pred_fallthru
      _
    %142 = vsyncpa [#allocation3], 1
    %143 = vsyncpa [#allocation5], 1

</llo_original>
